<compile_context>
chip_gen: v7x
topology: tpu7x:2x2x1
jax: 0.10.0
libtpu: 0.0.40
codegen_flags: <defaults>
</compile_context>

<pallas_src>
import functools

import jax
import jax.numpy as jnp
from jax import lax
from jax.experimental import pallas as pl
from jax.experimental.pallas import tpu as pltpu

BN_EPS = 1e-5
K_TAPS = 3  # kernel_size=3, padding=1


def _fused_kernel(x_ref, w1_ref, g1_ref, be1_ref, w2_ref, g2_ref, be2_ref,
                  o_ref, xp1_ref, xp2_ref, *, l_per_sample):
    """Two fused Stdconv1D blocks on a lane-dense (channels, N*L) layout.

    x_ref  : (C_in,  N*L)      channel-major input, N*L flattened onto lanes
    w*_ref : (3, C_out, C_x)   per-tap conv weights, tap k multiplies x[l + k - 1]
    g*/be* : (C_out, 1)        BatchNorm affine parameters
    o_ref  : (C_out, N*L)      output
    xp*_ref: (C_x, N*L + 2)    VMEM scratch used for in-kernel zero padding
    """
    nl = o_ref.shape[-1]
    inv_nl = 1.0 / nl

    # Per-sample boundary masks on the flattened N*L lane axis (conv padding=1):
    # a left/right tap must not read across a sample boundary.
    pos = lax.broadcasted_iota(jnp.int32, (1, nl), 1)
    first_pos = (pos % l_per_sample) == 0                   # within-sample l == 0
    last_pos = (pos % l_per_sample) == (l_per_sample - 1)   # within-sample l == L-1

    def conv_bn_relu(x2, xp_ref, w_ref, g_ref, be_ref):
        # --- in-kernel zero padding: one VMEM scratch store, no HBM copy ---
        xp_ref[...] = jnp.zeros_like(xp_ref)
        xp_ref[:, 1:1 + nl] = x2
        xp = xp_ref[...]
        x_m1 = jnp.where(first_pos, 0.0, xp[:, 0:nl])        # x[l-1], 0 at l == 0
        x_p1 = jnp.where(last_pos, 0.0, xp[:, 2:2 + nl])     # x[l+1], 0 at l == L-1

        # --- conv: 3 lane-dense matmuls (C_out, C_x) @ (C_x, N*L), f32 acc ---
        y = jnp.dot(w_ref[0], x_m1, preferred_element_type=jnp.float32)
        y = y + jnp.dot(w_ref[1], x2, preferred_element_type=jnp.float32)
        y = y + jnp.dot(w_ref[2], x_p1, preferred_element_type=jnp.float32)
        # Conv bias omitted: train-mode BN's mean subtraction cancels it exactly.

        # --- one-pass train-mode BatchNorm1d (biased variance) + ReLU ---
        s = jnp.sum(y, axis=-1, keepdims=True)
        ss = jnp.sum(y * y, axis=-1, keepdims=True)
        mean = s * inv_nl
        var = jnp.maximum(ss * inv_nl - mean * mean, 0.0)
        scale = lax.rsqrt(var + BN_EPS) * g_ref[...]
        shift = be_ref[...] - mean * scale
        return jnp.maximum(y * scale + shift, 0.0)

    h = conv_bn_relu(x_ref[...], xp1_ref, w1_ref, g1_ref, be1_ref)
    o_ref[...] = conv_bn_relu(h, xp2_ref, w2_ref, g2_ref, be2_ref).astype(o_ref.dtype)


def _stdconv1d_stack(x, params):
    """Fused forward: Stdconv1D -> Stdconv1D, single pallas_call."""
    (w1, b1, g1, be1), (w2, b2, g2, be2) = params
    del b1, b2  # absorbed exactly by train-mode BN mean subtraction
    n, c_in, l = x.shape
    c_out = w1.shape[0]
    nl = n * l

    # Lane-dense, channel-major 2D views (layout plumbing; tiny HBM-side ops).
    x2 = x.astype(jnp.float32).transpose(1, 0, 2).reshape(c_in, nl)
    w1t = jnp.transpose(w1, (2, 0, 1)).astype(jnp.float32)   # (K, C_out, C_in)
    w2t = jnp.transpose(w2, (2, 0, 1)).astype(jnp.float32)   # (K, C_out, C_out)

    flops = 2 * nl * c_out * K_TAPS * (c_in + c_out)
    bytes_accessed = 4 * (x2.size + w1t.size + w2t.size + 4 * c_out + c_out * nl)

    vmem = pl.BlockSpec(memory_space=pltpu.MemorySpace.VMEM)
    out2 = pl.pallas_call(
        functools.partial(_fused_kernel, l_per_sample=l),
        out_shape=jax.ShapeDtypeStruct((c_out, nl), jnp.float32),
        in_specs=[vmem] * 7,
        out_specs=vmem,
        scratch_shapes=[
            pltpu.VMEM((c_in, nl + 2), jnp.float32),
            pltpu.VMEM((c_out, nl + 2), jnp.float32),
        ],
        cost_estimate=pl.CostEstimate(
            flops=flops, transcendentals=2 * c_out, bytes_accessed=bytes_accessed),
    )(x2, w1t, g1, be1, w2t, g2, be2)

    # Back to PyTorch's NCL layout.
    return out2.reshape(c_out, n, l).transpose(1, 0, 2)


basic_unet_block = jax.jit(_stdconv1d_stack)


# ---------------- pure-JAX reference (for correctness check) ----------------
def _ref_block(x, w, b, gamma, beta):
    y = lax.conv_general_dilated(
        x, w, window_strides=(1,), padding=((1, 1),),
        dimension_numbers=("NCH", "OIH", "NCH"),
    ) + b[None, :, :]
    mean = jnp.mean(y, axis=(0, 2), keepdims=True)
    var = jnp.mean((y - mean) ** 2, axis=(0, 2), keepdims=True)
    y = (y - mean) * lax.rsqrt(var + BN_EPS) * gamma[None, :, :] + beta[None, :, :]
    return jnp.maximum(y, 0.0)


def _ref_forward(x, params):
    (w1, b1, g1, be1), (w2, b2, g2, be2) = params
    return _ref_block(_ref_block(x, w1, b1, g1, be1), w2, b2, g2, be2)


def make_params(key, c_in, c_out, k=3):
    ks = jax.random.split(key, 8)
    w1 = 0.2 * jax.random.normal(ks[0], (c_out, c_in, k), jnp.float32)
    b1 = 0.1 * jax.random.normal(ks[1], (c_out, 1), jnp.float32)
    g1 = 1.0 + 0.05 * jax.random.normal(ks[2], (c_out, 1), jnp.float32)
    be1 = 0.05 * jax.random.normal(ks[3], (c_out, 1), jnp.float32)
    w2 = 0.2 * jax.random.normal(ks[4], (c_out, c_out, k), jnp.float32)
    b2 = 0.1 * jax.random.normal(ks[5], (c_out, 1), jnp.float32)
    g2 = 1.0 + 0.05 * jax.random.normal(ks[6], (c_out, 1), jnp.float32)
    be2 = 0.05 * jax.random.normal(ks[7], (c_out, 1), jnp.float32)
    return (w1, b1, g1, be1), (w2, b2, g2, be2)


if __name__ == "__main__":
    key = jax.random.PRNGKey(0)
    kx, kp = jax.random.split(key)

    N, C_IN, C_OUT, L = 2, 4, 8, 16
    x = jax.random.normal(kx, (N, C_IN, L), jnp.float32)
    params = make_params(kp, C_IN, C_OUT)

    out = jax.block_until_ready(basic_unet_block(x, params))
    ref = _ref_forward(x, params)

    assert out.shape == (N, C_OUT, L)
    assert jnp.allclose(out, ref, atol=1e-4, rtol=1e-4), "mismatch vs JAX reference"

    print("KERNEL_OK")
</pallas_src>

<mosaic_0001>
module attributes {stable_mosaic.version = 11 : i64} {
  func.func @_fused_kernel(%arg0: memref<4x32xf32, #tpu.memory_space<vmem>>, %arg1: memref<3x8x4xf32, #tpu.memory_space<vmem>>, %arg2: memref<8x1xf32, #tpu.memory_space<vmem>>, %arg3: memref<8x1xf32, #tpu.memory_space<vmem>>, %arg4: memref<3x8x8xf32, #tpu.memory_space<vmem>>, %arg5: memref<8x1xf32, #tpu.memory_space<vmem>>, %arg6: memref<8x1xf32, #tpu.memory_space<vmem>>, %arg7: memref<8x32xf32, #tpu.memory_space<vmem>>, %arg8: memref<4x34xf32, #tpu.memory_space<vmem>>, %arg9: memref<8x34xf32, #tpu.memory_space<vmem>>) attributes {dimension_semantics = [], scalar_prefetch = 0 : i64, scratch_operands = 2 : i64, tpu.core_type = #tpu.core_type<tc>} {
    %0 = tpu.iota {dimensions = array<i32: 1>} : vector<1x32xi32>
    %c16_i32 = arith.constant 16 : i32
    %c0_i32 = arith.constant 0 : i32
    %1 = arith.cmpi eq, %c16_i32, %c0_i32 : i32
    %c1_i32 = arith.constant 1 : i32
    %2 = arith.select %1, %c1_i32, %c16_i32 : i32
    %3 = vector.broadcast %2 : i32 to vector<1x32xi32>
    %4 = arith.remsi %0, %3 : vector<1x32xi32>
    %c0_i32_0 = arith.constant 0 : i32
    %5 = vector.broadcast %c0_i32_0 : i32 to vector<1x32xi32>
    %6 = arith.cmpi ne, %4, %5 : vector<1x32xi32>
    %c0_i32_1 = arith.constant 0 : i32
    %7 = vector.broadcast %c0_i32_1 : i32 to vector<1x32xi32>
    %8 = arith.cmpi slt, %4, %7 : vector<1x32xi32>
    %c0_i32_2 = arith.constant 0 : i32
    %9 = arith.cmpi slt, %2, %c0_i32_2 : i32
    %10 = vector.broadcast %9 : i1 to vector<1x32xi1>
    %11 = vector.broadcast %10 : vector<1x32xi1> to vector<1x32xi1>
    %12 = arith.xori %8, %11 : vector<1x32xi1>
    %13 = arith.andi %12, %6 : vector<1x32xi1>
    %14 = vector.broadcast %2 : i32 to vector<1x32xi32>
    %15 = arith.addi %4, %14 : vector<1x32xi32>
    %16 = arith.select %13, %15, %4 : vector<1x32xi1>, vector<1x32xi32>
    %c0_i32_3 = arith.constant 0 : i32
    %17 = vector.broadcast %c0_i32_3 : i32 to vector<1x32xi32>
    %18 = arith.cmpi eq, %16, %17 : vector<1x32xi32>
    %c16_i32_4 = arith.constant 16 : i32
    %c0_i32_5 = arith.constant 0 : i32
    %19 = arith.cmpi eq, %c16_i32_4, %c0_i32_5 : i32
    %c1_i32_6 = arith.constant 1 : i32
    %20 = arith.select %19, %c1_i32_6, %c16_i32_4 : i32
    %21 = vector.broadcast %20 : i32 to vector<1x32xi32>
    %22 = arith.remsi %0, %21 : vector<1x32xi32>
    %c0_i32_7 = arith.constant 0 : i32
    %23 = vector.broadcast %c0_i32_7 : i32 to vector<1x32xi32>
    %24 = arith.cmpi ne, %22, %23 : vector<1x32xi32>
    %c0_i32_8 = arith.constant 0 : i32
    %25 = vector.broadcast %c0_i32_8 : i32 to vector<1x32xi32>
    %26 = arith.cmpi slt, %22, %25 : vector<1x32xi32>
    %c0_i32_9 = arith.constant 0 : i32
    %27 = arith.cmpi slt, %20, %c0_i32_9 : i32
    %28 = vector.broadcast %27 : i1 to vector<1x32xi1>
    %29 = vector.broadcast %28 : vector<1x32xi1> to vector<1x32xi1>
    %30 = arith.xori %26, %29 : vector<1x32xi1>
    %31 = arith.andi %30, %24 : vector<1x32xi1>
    %32 = vector.broadcast %20 : i32 to vector<1x32xi32>
    %33 = arith.addi %22, %32 : vector<1x32xi32>
    %34 = arith.select %31, %33, %22 : vector<1x32xi1>, vector<1x32xi32>
    %c15_i32 = arith.constant 15 : i32
    %35 = vector.broadcast %c15_i32 : i32 to vector<1x32xi32>
    %36 = arith.cmpi eq, %34, %35 : vector<1x32xi32>
    %c0 = arith.constant 0 : index
    %c0_10 = arith.constant 0 : index
    %37 = vector.load %arg0[%c0, %c0_10] : memref<4x32xf32, #tpu.memory_space<vmem>>, vector<4x32xf32>
    %cst = arith.constant 0.000000e+00 : f32
    %38 = vector.broadcast %cst : f32 to vector<4x34xf32>
    %c0_11 = arith.constant 0 : index
    %c0_12 = arith.constant 0 : index
    %39 = vector.load %arg8[%c0_11, %c0_12] : memref<4x34xf32, #tpu.memory_space<vmem>>, vector<4x34xf32>
    tpu.vector_store %arg8[%c0_11, %c0_12], %38 {strides = array<i32>} : memref<4x34xf32, #tpu.memory_space<vmem>>, vector<4x34xf32>,
    %c0_13 = arith.constant 0 : index
    %c1 = arith.constant 1 : index
    %40 = vector.load %arg8[%c0_13, %c1] : memref<4x34xf32, #tpu.memory_space<vmem>>, vector<4x32xf32>
    tpu.vector_store %arg8[%c0_13, %c1], %37 {strides = array<i32>} : memref<4x34xf32, #tpu.memory_space<vmem>>, vector<4x32xf32>,
    %c0_14 = arith.constant 0 : index
    %c0_15 = arith.constant 0 : index
    %41 = vector.load %arg8[%c0_14, %c0_15] : memref<4x34xf32, #tpu.memory_space<vmem>>, vector<4x34xf32>
    %42 = vector.extract_strided_slice %41 {offsets = [0, 0], sizes = [4, 32], strides = [1, 1]} : vector<4x34xf32> to vector<4x32xf32>
    %cst_16 = arith.constant 0.000000e+00 : f32
    %43 = vector.shape_cast %18 : vector<1x32xi1> to vector<1x32xi1>
    %44 = vector.broadcast %43 : vector<1x32xi1> to vector<4x32xi1>
    %45 = vector.broadcast %cst_16 : f32 to vector<4x32xf32>
    %46 = arith.select %44, %45, %42 : vector<4x32xi1>, vector<4x32xf32>
    %47 = vector.extract_strided_slice %41 {offsets = [0, 2], sizes = [4, 32], strides = [1, 1]} : vector<4x34xf32> to vector<4x32xf32>
    %cst_17 = arith.constant 0.000000e+00 : f32
    %48 = vector.shape_cast %36 : vector<1x32xi1> to vector<1x32xi1>
    %49 = vector.broadcast %48 : vector<1x32xi1> to vector<4x32xi1>
    %50 = vector.broadcast %cst_17 : f32 to vector<4x32xf32>
    %51 = arith.select %49, %50, %47 : vector<4x32xi1>, vector<4x32xf32>
    %c0_18 = arith.constant 0 : index
    %c0_19 = arith.constant 0 : index
    %c0_20 = arith.constant 0 : index
    %52 = vector.load %arg1[%c0_18, %c0_19, %c0_20] : memref<3x8x4xf32, #tpu.memory_space<vmem>>, vector<1x8x4xf32>
    %53 = vector.shape_cast %52 : vector<1x8x4xf32> to vector<8x4xf32>
    %cst_21 = arith.constant dense<0.000000e+00> : vector<8x32xf32>
    %54 = tpu.matmul %53, %46, %cst_21 {dimension_numbers = #tpu.dot_dimension_numbers<[1], [0], [0], [1], [0, 0, 1, 1], [], []>} : vector<8x4xf32>, vector<4x32xf32>, vector<8x32xf32> -> vector<8x32xf32>
    %c1_22 = arith.constant 1 : index
    %c0_23 = arith.constant 0 : index
    %c0_24 = arith.constant 0 : index
    %55 = vector.load %arg1[%c1_22, %c0_23, %c0_24] : memref<3x8x4xf32, #tpu.memory_space<vmem>>, vector<1x8x4xf32>
    %56 = vector.shape_cast %55 : vector<1x8x4xf32> to vector<8x4xf32>
    %cst_25 = arith.constant dense<0.000000e+00> : vector<8x32xf32>
    %57 = tpu.matmul %56, %37, %cst_25 {dimension_numbers = #tpu.dot_dimension_numbers<[1], [0], [0], [1], [0, 0, 1, 1], [], []>} : vector<8x4xf32>, vector<4x32xf32>, vector<8x32xf32> -> vector<8x32xf32>
    %58 = arith.addf %54, %57 : vector<8x32xf32>
    %c2 = arith.constant 2 : index
    %c0_26 = arith.constant 0 : index
    %c0_27 = arith.constant 0 : index
    %59 = vector.load %arg1[%c2, %c0_26, %c0_27] : memref<3x8x4xf32, #tpu.memory_space<vmem>>, vector<1x8x4xf32>
    %60 = vector.shape_cast %59 : vector<1x8x4xf32> to vector<8x4xf32>
    %cst_28 = arith.constant dense<0.000000e+00> : vector<8x32xf32>
    %61 = tpu.matmul %60, %51, %cst_28 {dimension_numbers = #tpu.dot_dimension_numbers<[1], [0], [0], [1], [0, 0, 1, 1], [], []>} : vector<8x4xf32>, vector<4x32xf32>, vector<8x32xf32> -> vector<8x32xf32>
    %62 = arith.addf %58, %61 : vector<8x32xf32>
    %cst_29 = arith.constant dense<0.000000e+00> : vector<8xf32>
    %63 = vector.multi_reduction <add>, %62, %cst_29 [1] : vector<8x32xf32> to vector<8xf32>
    %64 = vector.shape_cast %63 : vector<8xf32> to vector<8x1xf32>
    %65 = arith.mulf %62, %62 : vector<8x32xf32>
    %cst_30 = arith.constant dense<0.000000e+00> : vector<8xf32>
    %66 = vector.multi_reduction <add>, %65, %cst_30 [1] : vector<8x32xf32> to vector<8xf32>
    %67 = vector.shape_cast %66 : vector<8xf32> to vector<8x1xf32>
    %cst_31 = arith.constant 3.125000e-02 : f32
    %68 = vector.broadcast %cst_31 : f32 to vector<8x1xf32>
    %69 = arith.mulf %64, %68 : vector<8x1xf32>
    %cst_32 = arith.constant 3.125000e-02 : f32
    %70 = vector.broadcast %cst_32 : f32 to vector<8x1xf32>
    %71 = arith.mulf %67, %70 : vector<8x1xf32>
    %72 = arith.mulf %69, %69 : vector<8x1xf32>
    %73 = arith.subf %71, %72 : vector<8x1xf32>
    %cst_33 = arith.constant 0.000000e+00 : f32
    %74 = vector.broadcast %cst_33 : f32 to vector<8x1xf32>
    %75 = arith.maximumf %73, %74 : vector<8x1xf32>
    %cst_34 = arith.constant 9.99999974E-6 : f32
    %76 = vector.broadcast %cst_34 : f32 to vector<8x1xf32>
    %77 = arith.addf %75, %76 : vector<8x1xf32>
    %78 = math.rsqrt %77 : vector<8x1xf32>
    %c0_35 = arith.constant 0 : index
    %c0_36 = arith.constant 0 : index
    %79 = vector.load %arg2[%c0_35, %c0_36] : memref<8x1xf32, #tpu.memory_space<vmem>>, vector<8x1xf32>
    %80 = arith.mulf %78, %79 : vector<8x1xf32>
    %c0_37 = arith.constant 0 : index
    %c0_38 = arith.constant 0 : index
    %81 = vector.load %arg3[%c0_37, %c0_38] : memref<8x1xf32, #tpu.memory_space<vmem>>, vector<8x1xf32>
    %82 = arith.mulf %69, %80 : vector<8x1xf32>
    %83 = arith.subf %81, %82 : vector<8x1xf32>
    %84 = vector.broadcast %80 : vector<8x1xf32> to vector<8x32xf32>
    %85 = arith.mulf %62, %84 : vector<8x32xf32>
    %86 = vector.broadcast %83 : vector<8x1xf32> to vector<8x32xf32>
    %87 = arith.addf %85, %86 : vector<8x32xf32>
    %cst_39 = arith.constant 0.000000e+00 : f32
    %88 = vector.broadcast %cst_39 : f32 to vector<8x32xf32>
    %89 = arith.maximumf %87, %88 : vector<8x32xf32>
    %cst_40 = arith.constant 0.000000e+00 : f32
    %90 = vector.broadcast %cst_40 : f32 to vector<8x34xf32>
    %c0_41 = arith.constant 0 : index
    %c0_42 = arith.constant 0 : index
    %91 = vector.load %arg9[%c0_41, %c0_42] : memref<8x34xf32, #tpu.memory_space<vmem>>, vector<8x34xf32>
    tpu.vector_store %arg9[%c0_41, %c0_42], %90 {strides = array<i32>} : memref<8x34xf32, #tpu.memory_space<vmem>>, vector<8x34xf32>,
    %c0_43 = arith.constant 0 : index
    %c1_44 = arith.constant 1 : index
    %92 = vector.load %arg9[%c0_43, %c1_44] : memref<8x34xf32, #tpu.memory_space<vmem>>, vector<8x32xf32>
    tpu.vector_store %arg9[%c0_43, %c1_44], %89 {strides = array<i32>} : memref<8x34xf32, #tpu.memory_space<vmem>>, vector<8x32xf32>,
    %c0_45 = arith.constant 0 : index
    %c0_46 = arith.constant 0 : index
    %93 = vector.load %arg9[%c0_45, %c0_46] : memref<8x34xf32, #tpu.memory_space<vmem>>, vector<8x34xf32>
    %94 = vector.extract_strided_slice %93 {offsets = [0, 0], sizes = [8, 32], strides = [1, 1]} : vector<8x34xf32> to vector<8x32xf32>
    %cst_47 = arith.constant 0.000000e+00 : f32
    %95 = vector.shape_cast %18 : vector<1x32xi1> to vector<1x32xi1>
    %96 = vector.broadcast %95 : vector<1x32xi1> to vector<8x32xi1>
    %97 = vector.broadcast %cst_47 : f32 to vector<8x32xf32>
    %98 = arith.select %96, %97, %94 : vector<8x32xi1>, vector<8x32xf32>
    %99 = vector.extract_strided_slice %93 {offsets = [0, 2], sizes = [8, 32], strides = [1, 1]} : vector<8x34xf32> to vector<8x32xf32>
    %cst_48 = arith.constant 0.000000e+00 : f32
    %100 = vector.shape_cast %36 : vector<1x32xi1> to vector<1x32xi1>
    %101 = vector.broadcast %100 : vector<1x32xi1> to vector<8x32xi1>
    %102 = vector.broadcast %cst_48 : f32 to vector<8x32xf32>
    %103 = arith.select %101, %102, %99 : vector<8x32xi1>, vector<8x32xf32>
    %c0_49 = arith.constant 0 : index
    %c0_50 = arith.constant 0 : index
    %c0_51 = arith.constant 0 : index
    %104 = vector.load %arg4[%c0_49, %c0_50, %c0_51] : memref<3x8x8xf32, #tpu.memory_space<vmem>>, vector<1x8x8xf32>
    %105 = vector.shape_cast %104 : vector<1x8x8xf32> to vector<8x8xf32>
    %cst_52 = arith.constant dense<0.000000e+00> : vector<8x32xf32>
    %106 = tpu.matmul %105, %98, %cst_52 {dimension_numbers = #tpu.dot_dimension_numbers<[1], [0], [0], [1], [0, 0, 1, 1], [], []>} : vector<8x8xf32>, vector<8x32xf32>, vector<8x32xf32> -> vector<8x32xf32>
    %c1_53 = arith.constant 1 : index
    %c0_54 = arith.constant 0 : index
    %c0_55 = arith.constant 0 : index
    %107 = vector.load %arg4[%c1_53, %c0_54, %c0_55] : memref<3x8x8xf32, #tpu.memory_space<vmem>>, vector<1x8x8xf32>
    %108 = vector.shape_cast %107 : vector<1x8x8xf32> to vector<8x8xf32>
    %cst_56 = arith.constant dense<0.000000e+00> : vector<8x32xf32>
    %109 = tpu.matmul %108, %89, %cst_56 {dimension_numbers = #tpu.dot_dimension_numbers<[1], [0], [0], [1], [0, 0, 1, 1], [], []>} : vector<8x8xf32>, vector<8x32xf32>, vector<8x32xf32> -> vector<8x32xf32>
    %110 = arith.addf %106, %109 : vector<8x32xf32>
    %c2_57 = arith.constant 2 : index
    %c0_58 = arith.constant 0 : index
    %c0_59 = arith.constant 0 : index
    %111 = vector.load %arg4[%c2_57, %c0_58, %c0_59] : memref<3x8x8xf32, #tpu.memory_space<vmem>>, vector<1x8x8xf32>
    %112 = vector.shape_cast %111 : vector<1x8x8xf32> to vector<8x8xf32>
    %cst_60 = arith.constant dense<0.000000e+00> : vector<8x32xf32>
    %113 = tpu.matmul %112, %103, %cst_60 {dimension_numbers = #tpu.dot_dimension_numbers<[1], [0], [0], [1], [0, 0, 1, 1], [], []>} : vector<8x8xf32>, vector<8x32xf32>, vector<8x32xf32> -> vector<8x32xf32>
    %114 = arith.addf %110, %113 : vector<8x32xf32>
    %cst_61 = arith.constant dense<0.000000e+00> : vector<8xf32>
    %115 = vector.multi_reduction <add>, %114, %cst_61 [1] : vector<8x32xf32> to vector<8xf32>
    %116 = vector.shape_cast %115 : vector<8xf32> to vector<8x1xf32>
    %117 = arith.mulf %114, %114 : vector<8x32xf32>
    %cst_62 = arith.constant dense<0.000000e+00> : vector<8xf32>
    %118 = vector.multi_reduction <add>, %117, %cst_62 [1] : vector<8x32xf32> to vector<8xf32>
    %119 = vector.shape_cast %118 : vector<8xf32> to vector<8x1xf32>
    %cst_63 = arith.constant 3.125000e-02 : f32
    %120 = vector.broadcast %cst_63 : f32 to vector<8x1xf32>
    %121 = arith.mulf %116, %120 : vector<8x1xf32>
    %cst_64 = arith.constant 3.125000e-02 : f32
    %122 = vector.broadcast %cst_64 : f32 to vector<8x1xf32>
    %123 = arith.mulf %119, %122 : vector<8x1xf32>
    %124 = arith.mulf %121, %121 : vector<8x1xf32>
    %125 = arith.subf %123, %124 : vector<8x1xf32>
    %cst_65 = arith.constant 0.000000e+00 : f32
    %126 = vector.broadcast %cst_65 : f32 to vector<8x1xf32>
    %127 = arith.maximumf %125, %126 : vector<8x1xf32>
    %cst_66 = arith.constant 9.99999974E-6 : f32
    %128 = vector.broadcast %cst_66 : f32 to vector<8x1xf32>
    %129 = arith.addf %127, %128 : vector<8x1xf32>
    %130 = math.rsqrt %129 : vector<8x1xf32>
    %c0_67 = arith.constant 0 : index
    %c0_68 = arith.constant 0 : index
    %131 = vector.load %arg5[%c0_67, %c0_68] : memref<8x1xf32, #tpu.memory_space<vmem>>, vector<8x1xf32>
    %132 = arith.mulf %130, %131 : vector<8x1xf32>
    %c0_69 = arith.constant 0 : index
    %c0_70 = arith.constant 0 : index
    %133 = vector.load %arg6[%c0_69, %c0_70] : memref<8x1xf32, #tpu.memory_space<vmem>>, vector<8x1xf32>
    %134 = arith.mulf %121, %132 : vector<8x1xf32>
    %135 = arith.subf %133, %134 : vector<8x1xf32>
    %136 = vector.broadcast %132 : vector<8x1xf32> to vector<8x32xf32>
    %137 = arith.mulf %114, %136 : vector<8x32xf32>
    %138 = vector.broadcast %135 : vector<8x1xf32> to vector<8x32xf32>
    %139 = arith.addf %137, %138 : vector<8x32xf32>
    %cst_71 = arith.constant 0.000000e+00 : f32
    %140 = vector.broadcast %cst_71 : f32 to vector<8x32xf32>
    %141 = arith.maximumf %139, %140 : vector<8x32xf32>
    %c0_72 = arith.constant 0 : index
    %c0_73 = arith.constant 0 : index
    %142 = vector.load %arg7[%c0_72, %c0_73] : memref<8x32xf32, #tpu.memory_space<vmem>>, vector<8x32xf32>
    tpu.vector_store %arg7[%c0_72, %c0_73], %141 {strides = array<i32>} : memref<8x32xf32, #tpu.memory_space<vmem>>, vector<8x32xf32>,
    return
  }
}

</mosaic_0001>

<llo_original>
// kernel: _stdconv1d_stack.1
$region0: #{_stdconv1d_stack.1}
  #allocation0 [shape = 'u32[]', space=smem, size = 0x4, offset = 0x4, fixed_abs, tag = 'smem constant byte address 0x4 - core index']
  #allocation1 [shape = 'u32[144,128]{1,0:T(1,128)}', space=vmem, size = 0x12000, scoped, tag = 'internal scratch']
  #allocation2 [shape = 'f32[4,34]{1,0:T(4,128)}', space=vmem, size = 0x800, scoped, tag = 'scratch operand']
  #allocation3 [shape = 'f32[8,34]{1,0:T(8,128)}', space=vmem, size = 0x1000, scoped, tag = 'scratch operand']
  %s0 = inlined_call_operand.vmem [shape: f32[4,32], index: 0, kind: input, shape index: {}]
  %s1 = inlined_call_operand.vmem [shape: f32[3,8,4], index: 1, kind: input, shape index: {}]
  %s2 = inlined_call_operand.vmem [shape: f32[8,1], index: 2, kind: input, shape index: {}]
  %s3 = inlined_call_operand.vmem [shape: f32[8,1], index: 3, kind: input, shape index: {}]
  %s4 = inlined_call_operand.vmem [shape: f32[3,8,8], index: 4, kind: input, shape index: {}]
  %s5 = inlined_call_operand.vmem [shape: f32[8,1], index: 5, kind: input, shape index: {}]
  %s6 = inlined_call_operand.vmem [shape: f32[8,1], index: 6, kind: input, shape index: {}]
  %s7 = inlined_call_operand.vmem [shape: f32[8,32], index: 7, kind: output, shape index: {}]
  %s8 = sld [smem:[#allocation0]]
  $region38: #{_stdconv1d_stack.1} parent=0
    _
  %s10 = ssub.s32 1, %s8
  %s11 = scalar_select 0, %s10, %s8
  // Predicated region
  $region2: #{_stdconv1d_stack.1} parent=0 // pred_check
    _
  $region3: #{_stdconv1d_stack.1} parent=0 // pred_check_branch
    %13 = sbr.rel (0) target = $region5
  $region4: #{_stdconv1d_stack.1} parent=0 // pred_region
    _
  $region5: #{_stdconv1d_stack.1} parent=0 // pred_fallthru
    _
  // Predicated region
  $region6: #{_stdconv1d_stack.1} parent=0 // pred_check
    _
  $region7: #{_stdconv1d_stack.1} parent=0 // pred_check_branch
    %15 = sbr.rel (0) target = $region9
  $region8: #{_stdconv1d_stack.1} parent=0 // pred_region
    _
  $region9: #{_stdconv1d_stack.1} parent=0 // pred_fallthru
    _
  // Predicated region
  $region10: #{_stdconv1d_stack.1} parent=0 // pred_check
    _
  $region11: #{_stdconv1d_stack.1} parent=0 // pred_check_branch
    %17 = sbr.rel (0) target = $region13
  $region12: #{_stdconv1d_stack.1} parent=0 // pred_region
    _
  $region13: #{_stdconv1d_stack.1} parent=0 // pred_fallthru
    _
  // Predicated region
  $region14: #{_stdconv1d_stack.1} parent=0 // pred_check
    _
  $region15: #{_stdconv1d_stack.1} parent=0 // pred_check_branch
    %19 = sbr.rel (0) target = $region17
  $region16: #{_stdconv1d_stack.1} parent=0 // pred_region
    _
  $region17: #{_stdconv1d_stack.1} parent=0 // pred_fallthru
    _
  // Predicated region
  $region18: #{_stdconv1d_stack.1} parent=0 // pred_check
    _
  $region19: #{_stdconv1d_stack.1} parent=0 // pred_check_branch
    %21 = sbr.rel (0) target = $region21
  $region20: #{_stdconv1d_stack.1} parent=0 // pred_region
    _
  $region21: #{_stdconv1d_stack.1} parent=0 // pred_fallthru
    _
  // Predicated region
  $region22: #{_stdconv1d_stack.1} parent=0 // pred_check
    _
  $region23: #{_stdconv1d_stack.1} parent=0 // pred_check_branch
    %23 = sbr.rel (0) target = $region25
  $region24: #{_stdconv1d_stack.1} parent=0 // pred_region
    _
  $region25: #{_stdconv1d_stack.1} parent=0 // pred_fallthru
    _
  // Predicated region
  $region26: #{_stdconv1d_stack.1} parent=0 // pred_check
    _
  $region27: #{_stdconv1d_stack.1} parent=0 // pred_check_branch
    %25 = sbr.rel (0) target = $region29
  $region28: #{_stdconv1d_stack.1} parent=0 // pred_region
    _
  $region29: #{_stdconv1d_stack.1} parent=0 // pred_fallthru
    _
  %v26 = vlaneseq
  %v27 = vand.u32 %v26, 127
  %vm28 = vcmp.lt.s32.totalorder %v27, 0
  %v29 = vsub.s32 0, %v27
  %v30 = vsel %vm28, %v29, %v27
  %v31 = vshrl.u32 %v30, 4
  %v32 = vand.u32 %v30, 15
  %v33 = vsub.s32 0, %v32
  %v34 = vsel %vm28, %v33, %v32
  %vm35 = vcmp.ne.s32.totalorder %v34, 0
  %vm36 = vcmp.lt.s32.totalorder %v34, 0
  %vm37 = vmand %vm36, %vm35
  %v38 = vadd.s32 %v34, 16
  %v39 = vsel %vm37, %v38, %v34
  %vm40 = vcmp.eq.s32.totalorder %v39, 0
  %vm41 = vcmp.eq.s32.totalorder %v39, 15
  %v42 = vld [vmem:[%s0] sm:$0xf]
  %vm43 = vcmask 273408
  %44 = vst.msk [vmem:[#allocation2] sm:$0xf] %vm43, 0.0
  %46 = vrot.lane.b32.xlu0 %v42, 1
  %v47 = vpop.permute.xlu0 %46
  %vm49 = vcmask 265224
  %50 = vst.msk [vmem:[#allocation2] sm:$0xf] %vm49, %v47
  %v51 = vld [vmem:[#allocation2] sm:$0xf]
  %v52 = vsel %vm40, 1, 0
  %vm53 = vcmp.eq.s32.totalorder %v52, 1
  %v54 = vsel %vm53, 0.0, %v51
  %v55 = vsel %vm41, 1, 0
  %vm56 = vcmp.eq.s32.totalorder %v55, 1
  %58 = vrot.lane.b32.xlu0 %v51, 126
  %v59 = vpop.permute.xlu0 %58
  %v61 = vsel %vm56, 0.0, %v59
  %v62 = vld [vmem:[%s1] sm:$0xff]
  %s63 = scalar_lea.vmem %s1, 8
  %v64 = vld [vmem:[%s63] sm:$0xff]
  %vm65 = vcmask 31744
  %v67 = vsel %vm65, %v64, 0
  %vm69 = vcmask 1043456
  %v70 = vsel %vm69, %v42, 0
  %72 = vmatprep.subr.mxu0 0.0
  %73 = vmatpush1.msra.mxu0 %v70
  %74 = vmatprep.subr.mxu0 0.0
  %75 = vmatpush1.msra.mxu0 0.0
  %76 = vmatprep.subr.mxu0 0.0
  %77 = vmatpush1.msra.mxu0 0.0
  %78 = vmatprep.subr.mxu0 0.0
  %79 = vmatpush1.msra.mxu0 0.0
  %80 = vmatprep.subr.mxu0 0.0
  %81 = vmatpush1.msra.mxu0 0.0
  %82 = vmatprep.subr.mxu0 0.0
  %83 = vmatpush1.msra.mxu0 0.0
  %84 = vmatprep.subr.mxu0 0.0
  %85 = vmatpush1.msra.mxu0 0.0
  %86 = vmatprep.subr.mxu0 0.0
  %87 = vmatpush1.msra.mxu0 0.0
  %88 = vmatprep.subr.mxu0 0.0
  %89 = vmatpush1.msra.mxu0 0.0
  %90 = vmatprep.subr.mxu0 0.0
  %91 = vmatpush1.msra.mxu0 0.0
  %92 = vmatprep.subr.mxu0 0.0
  %93 = vmatpush1.msra.mxu0 0.0
  %94 = vmatprep.subr.mxu0 0.0
  %95 = vmatpush1.msra.mxu0 0.0
  %96 = vmatprep.subr.mxu0 0.0
  %97 = vmatpush1.msra.mxu0 0.0
  %98 = vmatprep.subr.mxu0 0.0
  %99 = vmatpush1.msra.mxu0 0.0
  %100 = vmatprep.subr.mxu0 0.0
  %101 = vmatpush1.msra.mxu0 0.0
  %102 = vmatprep.subr.mxu0 0.0
  %103 = vmatpush1.msra.mxu0 0.0
  %104 = vmatprep.subr.mxu0 0.0
  %105 = vmatpush1.msra.mxu0 0.0
  %106 = vmatprep.subr.mxu0 0.0
  %107 = vmatpush1.msra.mxu0 0.0
  %108 = vmatprep.subr.mxu0 0.0
  %109 = vmatpush1.msra.mxu0 0.0
  %110 = vmatprep.subr.mxu0 0.0
  %111 = vmatpush1.msra.mxu0 0.0
  %112 = vmatprep.subr.mxu0 0.0
  %113 = vmatpush1.msra.mxu0 0.0
  %114 = vmatprep.subr.mxu0 0.0
  %115 = vmatpush1.msra.mxu0 0.0
  %116 = vmatprep.subr.mxu0 0.0
  %117 = vmatpush1.msra.mxu0 0.0
  %118 = vmatprep.subr.mxu0 0.0
  %119 = vmatpush1.msra.mxu0 0.0
  %120 = vmatprep.subr.mxu0 0.0
  %121 = vmatpush1.msra.mxu0 0.0
  %122 = vmatprep.subr.mxu0 0.0
  %123 = vmatpush1.msra.mxu0 0.0
  %124 = vmatprep.subr.mxu0 0.0
  %125 = vmatpush1.msra.mxu0 0.0
  %126 = vmatprep.subr.mxu0 0.0
  %127 = vmatpush1.msra.mxu0 0.0
  %128 = vmatprep.subr.mxu0 0.0
  %129 = vmatpush1.msra.mxu0 0.0
  %130 = vmatprep.subr.mxu0 0.0
  %131 = vmatpush1.msra.mxu0 0.0
  %132 = vmatprep.subr.mxu0 0.0
  %133 = vmatpush1.msra.mxu0 0.0
  %134 = vmatprep.subr.mxu0 0.0
  %135 = vmatpush1.msra.mxu0 0.0
  %136 = vmatprep.mubr.f32.mxu0 0.0
  %137 = vmatmul.mubr.f32.gmra.mrb[0].mxu0 %v67
  %v138 = vpop.f32.mrb[0].mxu0
  %v139 = vadd.f32 0.0, %v138
  %v140 = vpop.f32.mrb[0].mxu0
  %141 = vdwg.mxu0
  %v143 = vsel %vm65, %v62, 0
  %v146 = vsel %vm69, %v54, 0
  %148 = vmatprep.subr.mxu0 0.0
  %149 = vmatpush1.msra.mxu0 %v146
  %150 = vmatprep.subr.mxu0 0.0
  %151 = vmatpush1.msra.mxu0 0.0
  %152 = vmatprep.subr.mxu0 0.0
  %153 = vmatpush1.msra.mxu0 0.0
  %154 = vmatprep.subr.mxu0 0.0
  %155 = vmatpush1.msra.mxu0 0.0
  %156 = vmatprep.subr.mxu0 0.0
  %157 = vmatpush1.msra.mxu0 0.0
  %158 = vmatprep.subr.mxu0 0.0
  %159 = vmatpush1.msra.mxu0 0.0
  %160 = vmatprep.subr.mxu0 0.0
  %161 = vmatpush1.msra.mxu0 0.0
  %162 = vmatprep.subr.mxu0 0.0
  %163 = vmatpush1.msra.mxu0 0.0
  %164 = vmatprep.subr.mxu0 0.0
  %165 = vmatpush1.msra.mxu0 0.0
  %166 = vmatprep.subr.mxu0 0.0
  %167 = vmatpush1.msra.mxu0 0.0
  %168 = vmatprep.subr.mxu0 0.0
  %169 = vmatpush1.msra.mxu0 0.0
  %170 = vmatprep.subr.mxu0 0.0
  %171 = vmatpush1.msra.mxu0 0.0
  %172 = vmatprep.subr.mxu0 0.0
  %173 = vmatpush1.msra.mxu0 0.0
  %174 = vmatprep.subr.mxu0 0.0
  %175 = vmatpush1.msra.mxu0 0.0
  %176 = vmatprep.subr.mxu0 0.0
  %177 = vmatpush1.msra.mxu0 0.0
  %178 = vmatprep.subr.mxu0 0.0
  %179 = vmatpush1.msra.mxu0 0.0
  %180 = vmatprep.subr.mxu0 0.0
  %181 = vmatpush1.msra.mxu0 0.0
  %182 = vmatprep.subr.mxu0 0.0
  %183 = vmatpush1.msra.mxu0 0.0
  %184 = vmatprep.subr.mxu0 0.0
  %185 = vmatpush1.msra.mxu0 0.0
  %186 = vmatprep.subr.mxu0 0.0
  %187 = vmatpush1.msra.mxu0 0.0
  %188 = vmatprep.subr.mxu0 0.0
  %189 = vmatpush1.msra.mxu0 0.0
  %190 = vmatprep.subr.mxu0 0.0
  %191 = vmatpush1.msra.mxu0 0.0
  %192 = vmatprep.subr.mxu0 0.0
  %193 = vmatpush1.msra.mxu0 0.0
  %194 = vmatprep.subr.mxu0 0.0
  %195 = vmatpush1.msra.mxu0 0.0
  %196 = vmatprep.subr.mxu0 0.0
  %197 = vmatpush1.msra.mxu0 0.0
  %198 = vmatprep.subr.mxu0 0.0
  %199 = vmatpush1.msra.mxu0 0.0
  %200 = vmatprep.subr.mxu0 0.0
  %201 = vmatpush1.msra.mxu0 0.0
  %202 = vmatprep.subr.mxu0 0.0
  %203 = vmatpush1.msra.mxu0 0.0
  %204 = vmatprep.subr.mxu0 0.0
  %205 = vmatpush1.msra.mxu0 0.0
  %206 = vmatprep.subr.mxu0 0.0
  %207 = vmatpush1.msra.mxu0 0.0
  %208 = vmatprep.subr.mxu0 0.0
  %209 = vmatpush1.msra.mxu0 0.0
  %210 = vmatprep.subr.mxu0 0.0
  %211 = vmatpush1.msra.mxu0 0.0
  %212 = vmatprep.mubr.f32.mxu0 0.0
  %213 = vmatmul.mubr.f32.gmra.mrb[0].mxu0 %v143
  %v214 = vpop.f32.mrb[0].mxu0
  %v215 = vadd.f32 %v139, %v214
  %v216 = vpop.f32.mrb[0].mxu0
  %217 = vdwg.mxu0
  %s218 = scalar_lea.vmem %s1, 16
  %v219 = vld [vmem:[%s218] sm:$0xff]
  %v221 = vsel %vm65, %v219, 0
  %v224 = vsel %vm69, %v61, 0
  %226 = vmatprep.subr.mxu0 0.0
  %227 = vmatpush1.msra.mxu0 %v224
  %228 = vmatprep.subr.mxu0 0.0
  %229 = vmatpush1.msra.mxu0 0.0
  %230 = vmatprep.subr.mxu0 0.0
  %231 = vmatpush1.msra.mxu0 0.0
  %232 = vmatprep.subr.mxu0 0.0
  %233 = vmatpush1.msra.mxu0 0.0
  %234 = vmatprep.subr.mxu0 0.0
  %235 = vmatpush1.msra.mxu0 0.0
  %236 = vmatprep.subr.mxu0 0.0
  %237 = vmatpush1.msra.mxu0 0.0
  %238 = vmatprep.subr.mxu0 0.0
  %239 = vmatpush1.msra.mxu0 0.0
  %240 = vmatprep.subr.mxu0 0.0
  %241 = vmatpush1.msra.mxu0 0.0
  %242 = vmatprep.subr.mxu0 0.0
  %243 = vmatpush1.msra.mxu0 0.0
  %244 = vmatprep.subr.mxu0 0.0
  %245 = vmatpush1.msra.mxu0 0.0
  %246 = vmatprep.subr.mxu0 0.0
  %247 = vmatpush1.msra.mxu0 0.0
  %248 = vmatprep.subr.mxu0 0.0
  %249 = vmatpush1.msra.mxu0 0.0
  %250 = vmatprep.subr.mxu0 0.0
  %251 = vmatpush1.msra.mxu0 0.0
  %252 = vmatprep.subr.mxu0 0.0
  %253 = vmatpush1.msra.mxu0 0.0
  %254 = vmatprep.subr.mxu0 0.0
  %255 = vmatpush1.msra.mxu0 0.0
  %256 = vmatprep.subr.mxu0 0.0
  %257 = vmatpush1.msra.mxu0 0.0
  %258 = vmatprep.subr.mxu0 0.0
  %259 = vmatpush1.msra.mxu0 0.0
  %260 = vmatprep.subr.mxu0 0.0
  %261 = vmatpush1.msra.mxu0 0.0
  %262 = vmatprep.subr.mxu0 0.0
  %263 = vmatpush1.msra.mxu0 0.0
  %264 = vmatprep.subr.mxu0 0.0
  %265 = vmatpush1.msra.mxu0 0.0
  %266 = vmatprep.subr.mxu0 0.0
  %267 = vmatpush1.msra.mxu0 0.0
  %268 = vmatprep.subr.mxu0 0.0
  %269 = vmatpush1.msra.mxu0 0.0
  %270 = vmatprep.subr.mxu0 0.0
  %271 = vmatpush1.msra.mxu0 0.0
  %272 = vmatprep.subr.mxu0 0.0
  %273 = vmatpush1.msra.mxu0 0.0
  %274 = vmatprep.subr.mxu0 0.0
  %275 = vmatpush1.msra.mxu0 0.0
  %276 = vmatprep.subr.mxu0 0.0
  %277 = vmatpush1.msra.mxu0 0.0
  %278 = vmatprep.subr.mxu0 0.0
  %279 = vmatpush1.msra.mxu0 0.0
  %280 = vmatprep.subr.mxu0 0.0
  %281 = vmatpush1.msra.mxu0 0.0
  %282 = vmatprep.subr.mxu0 0.0
  %283 = vmatpush1.msra.mxu0 0.0
  %284 = vmatprep.subr.mxu0 0.0
  %285 = vmatpush1.msra.mxu0 0.0
  %286 = vmatprep.subr.mxu0 0.0
  %287 = vmatpush1.msra.mxu0 0.0
  %288 = vmatprep.subr.mxu0 0.0
  %289 = vmatpush1.msra.mxu0 0.0
  %290 = vmatprep.mubr.f32.mxu0 0.0
  %291 = vmatmul.mubr.f32.gmra.mrb[0].mxu0 %v221
  %v292 = vpop.f32.mrb[0].mxu0
  %v293 = vadd.f32 0.0, %v292
  %v294 = vpop.f32.mrb[0].mxu0
  %295 = vdwg.mxu0
  %v296 = vadd.f32 %v215, %v293
  %vm297 = vcmask 261120
  %v298 = vsel %vm297, %v296, 0.0
  %299 = vadd.xlane.f32.xlu0 %v298
  %v300 = vpop.xlane.xlu0 %299
  %v301 = vmul.f32 %v296, %v296
  %v302 = vsel %vm297, %v301, 0.0
  %303 = vadd.xlane.f32.xlu0 %v302
  %v304 = vpop.xlane.xlu0 %303
  %v305 = vmul.f32 %v300, 0.03125
  %v306 = vmul.f32 %v304, 0.03125
  %v307 = vmul.f32 %v305, %v305
  %v308 = vsub.f32 %v306, %v307
  %v309 = vmax.f32 %v308, 0.0
  %v310 = vadd.f32 %v309, 1e-05
  %v311 = vrsqrt.pop %v310
  %v312 = vld [vmem:[%s2] sm:$0xff]
  %v313 = vmul.f32 %v311, %v312
  %v314 = vld [vmem:[%s3] sm:$0xff]
  %v315 = vmul.f32 %v305, %v313
  %v316 = vsub.f32 %v314, %v315
  %318 = vset.pattern.permute.xlu0 0
  %319 = vperm.xlu0 %318, %v313
  %v320 = vpop.permute.xlu0 %319
  %v322 = vmul.f32 %v296, %v320
  %324 = vset.pattern.permute.xlu0 0
  %325 = vperm.xlu0 %324, %v316
  %v326 = vpop.permute.xlu0 %325
  %v328 = vadd.f32 %v322, %v326
  %v329 = vmax.f32 %v328, 0.0
  %vm330 = vcmask 277504
  %331 = vst.msk [vmem:[#allocation3] sm:$0xff] %vm330, 0.0
  %333 = vrot.lane.b32.xlu0 %v329, 1
  %v334 = vpop.permute.xlu0 %333
  %vm336 = vcmask 269320
  %337 = vst.msk [vmem:[#allocation3] sm:$0xff] %vm336, %v334
  %v338 = vld [vmem:[#allocation3] sm:$0xff]
  %v339 = vsel %vm53, 0.0, %v338
  %341 = vrot.lane.b32.xlu0 %v338, 126
  %v342 = vpop.permute.xlu0 %341
  %v344 = vsel %vm56, 0.0, %v342
  %v345 = vld [vmem:[%s4] sm:$0xff]
  %s346 = scalar_lea.vmem %s4, 8
  %v347 = vld [vmem:[%s346] sm:$0xff]
  %vm348 = vcmask 64512
  %v350 = vsel %vm348, %v347, 0
  %352 = vmatprep.subr.mxu0 0.0
  %353 = vmatpush1.msra.mxu0 %v329
  %354 = vmatprep.subr.mxu0 0.0
  %355 = vmatpush1.msra.mxu0 0.0
  %356 = vmatprep.subr.mxu0 0.0
  %357 = vmatpush1.msra.mxu0 0.0
  %358 = vmatprep.subr.mxu0 0.0
  %359 = vmatpush1.msra.mxu0 0.0
  %360 = vmatprep.subr.mxu0 0.0
  %361 = vmatpush1.msra.mxu0 0.0
  %362 = vmatprep.subr.mxu0 0.0
  %363 = vmatpush1.msra.mxu0 0.0
  %364 = vmatprep.subr.mxu0 0.0
  %365 = vmatpush1.msra.mxu0 0.0
  %366 = vmatprep.subr.mxu0 0.0
  %367 = vmatpush1.msra.mxu0 0.0
  %368 = vmatprep.subr.mxu0 0.0
  %369 = vmatpush1.msra.mxu0 0.0
  %370 = vmatprep.subr.mxu0 0.0
  %371 = vmatpush1.msra.mxu0 0.0
  %372 = vmatprep.subr.mxu0 0.0
  %373 = vmatpush1.msra.mxu0 0.0
  %374 = vmatprep.subr.mxu0 0.0
  %375 = vmatpush1.msra.mxu0 0.0
  %376 = vmatprep.subr.mxu0 0.0
  %377 = vmatpush1.msra.mxu0 0.0
  %378 = vmatprep.subr.mxu0 0.0
  %379 = vmatpush1.msra.mxu0 0.0
  %380 = vmatprep.subr.mxu0 0.0
  %381 = vmatpush1.msra.mxu0 0.0
  %382 = vmatprep.subr.mxu0 0.0
  %383 = vmatpush1.msra.mxu0 0.0
  %384 = vmatprep.subr.mxu0 0.0
  %385 = vmatpush1.msra.mxu0 0.0
  %386 = vmatprep.subr.mxu0 0.0
  %387 = vmatpush1.msra.mxu0 0.0
  %388 = vmatprep.subr.mxu0 0.0
  %389 = vmatpush1.msra.mxu0 0.0
  %390 = vmatprep.subr.mxu0 0.0
  %391 = vmatpush1.msra.mxu0 0.0
  %392 = vmatprep.subr.mxu0 0.0
  %393 = vmatpush1.msra.mxu0 0.0
  %394 = vmatprep.subr.mxu0 0.0
  %395 = vmatpush1.msra.mxu0 0.0
  %396 = vmatprep.subr.mxu0 0.0
  %397 = vmatpush1.msra.mxu0 0.0
  %398 = vmatprep.subr.mxu0 0.0
  %399 = vmatpush1.msra.mxu0 0.0
  %400 = vmatprep.subr.mxu0 0.0
  %401 = vmatpush1.msra.mxu0 0.0
  %402 = vmatprep.subr.mxu0 0.0
  %403 = vmatpush1.msra.mxu0 0.0
  %404 = vmatprep.subr.mxu0 0.0
  %405 = vmatpush1.msra.mxu0 0.0
  %406 = vmatprep.subr.mxu0 0.0
  %407 = vmatpush1.msra.mxu0 0.0
  %408 = vmatprep.subr.mxu0 0.0
  %409 = vmatpush1.msra.mxu0 0.0
  %410 = vmatprep.subr.mxu0 0.0
  %411 = vmatpush1.msra.mxu0 0.0
  %412 = vmatprep.subr.mxu0 0.0
  %413 = vmatpush1.msra.mxu0 0.0
  %414 = vmatprep.subr.mxu0 0.0
  %415 = vmatpush1.msra.mxu0 0.0
  %416 = vmatprep.mubr.f32.mxu0 0.0
  %417 = vmatmul.mubr.f32.gmra.mrb[0].mxu0 %v350
  %v418 = vpop.f32.mrb[0].mxu0
  %v419 = vadd.f32 0.0, %v418
  %v420 = vpop.f32.mrb[0].mxu0
  %421 = vdwg.mxu0
  %v423 = vsel %vm348, %v345, 0
  %425 = vmatprep.subr.mxu0 0.0
  %426 = vmatpush1.msra.mxu0 %v339
  %427 = vmatprep.subr.mxu0 0.0
  %428 = vmatpush1.msra.mxu0 0.0
  %429 = vmatprep.subr.mxu0 0.0
  %430 = vmatpush1.msra.mxu0 0.0
  %431 = vmatprep.subr.mxu0 0.0
  %432 = vmatpush1.msra.mxu0 0.0
  %433 = vmatprep.subr.mxu0 0.0
  %434 = vmatpush1.msra.mxu0 0.0
  %435 = vmatprep.subr.mxu0 0.0
  %436 = vmatpush1.msra.mxu0 0.0
  %437 = vmatprep.subr.mxu0 0.0
  %438 = vmatpush1.msra.mxu0 0.0
  %439 = vmatprep.subr.mxu0 0.0
  %440 = vmatpush1.msra.mxu0 0.0
  %441 = vmatprep.subr.mxu0 0.0
  %442 = vmatpush1.msra.mxu0 0.0
  %443 = vmatprep.subr.mxu0 0.0
  %444 = vmatpush1.msra.mxu0 0.0
  %445 = vmatprep.subr.mxu0 0.0
  %446 = vmatpush1.msra.mxu0 0.0
  %447 = vmatprep.subr.mxu0 0.0
  %448 = vmatpush1.msra.mxu0 0.0
  %449 = vmatprep.subr.mxu0 0.0
  %450 = vmatpush1.msra.mxu0 0.0
  %451 = vmatprep.subr.mxu0 0.0
  %452 = vmatpush1.msra.mxu0 0.0
  %453 = vmatprep.subr.mxu0 0.0
  %454 = vmatpush1.msra.mxu0 0.0
  %455 = vmatprep.subr.mxu0 0.0
  %456 = vmatpush1.msra.mxu0 0.0
  %457 = vmatprep.subr.mxu0 0.0
  %458 = vmatpush1.msra.mxu0 0.0
  %459 = vmatprep.subr.mxu0 0.0
  %460 = vmatpush1.msra.mxu0 0.0
  %461 = vmatprep.subr.mxu0 0.0
  %462 = vmatpush1.msra.mxu0 0.0
  %463 = vmatprep.subr.mxu0 0.0
  %464 = vmatpush1.msra.mxu0 0.0
  %465 = vmatprep.subr.mxu0 0.0
  %466 = vmatpush1.msra.mxu0 0.0
  %467 = vmatprep.subr.mxu0 0.0
  %468 = vmatpush1.msra.mxu0 0.0
  %469 = vmatprep.subr.mxu0 0.0
  %470 = vmatpush1.msra.mxu0 0.0
  %471 = vmatprep.subr.mxu0 0.0
  %472 = vmatpush1.msra.mxu0 0.0
  %473 = vmatprep.subr.mxu0 0.0
  %474 = vmatpush1.msra.mxu0 0.0
  %475 = vmatprep.subr.mxu0 0.0
  %476 = vmatpush1.msra.mxu0 0.0
  %477 = vmatprep.subr.mxu0 0.0
  %478 = vmatpush1.msra.mxu0 0.0
  %479 = vmatprep.subr.mxu0 0.0
  %480 = vmatpush1.msra.mxu0 0.0
  %481 = vmatprep.subr.mxu0 0.0
  %482 = vmatpush1.msra.mxu0 0.0
  %483 = vmatprep.subr.mxu0 0.0
  %484 = vmatpush1.msra.mxu0 0.0
  %485 = vmatprep.subr.mxu0 0.0
  %486 = vmatpush1.msra.mxu0 0.0
  %487 = vmatprep.subr.mxu0 0.0
  %488 = vmatpush1.msra.mxu0 0.0
  %489 = vmatprep.mubr.f32.mxu0 0.0
  %490 = vmatmul.mubr.f32.gmra.mrb[0].mxu0 %v423
  %v491 = vpop.f32.mrb[0].mxu0
  %v492 = vadd.f32 %v419, %v491
  %v493 = vpop.f32.mrb[0].mxu0
  %494 = vdwg.mxu0
  %s495 = scalar_lea.vmem %s4, 16
  %v496 = vld [vmem:[%s495] sm:$0xff]
  %v498 = vsel %vm348, %v496, 0
  %500 = vmatprep.subr.mxu0 0.0
  %501 = vmatpush1.msra.mxu0 %v344
  %502 = vmatprep.subr.mxu0 0.0
  %503 = vmatpush1.msra.mxu0 0.0
  %504 = vmatprep.subr.mxu0 0.0
  %505 = vmatpush1.msra.mxu0 0.0
  %506 = vmatprep.subr.mxu0 0.0
  %507 = vmatpush1.msra.mxu0 0.0
  %508 = vmatprep.subr.mxu0 0.0
  %509 = vmatpush1.msra.mxu0 0.0
  %510 = vmatprep.subr.mxu0 0.0
  %511 = vmatpush1.msra.mxu0 0.0
  %512 = vmatprep.subr.mxu0 0.0
  %513 = vmatpush1.msra.mxu0 0.0
  %514 = vmatprep.subr.mxu0 0.0
  %515 = vmatpush1.msra.mxu0 0.0
  %516 = vmatprep.subr.mxu0 0.0
  %517 = vmatpush1.msra.mxu0 0.0
  %518 = vmatprep.subr.mxu0 0.0
  %519 = vmatpush1.msra.mxu0 0.0
  %520 = vmatprep.subr.mxu0 0.0
  %521 = vmatpush1.msra.mxu0 0.0
  %522 = vmatprep.subr.mxu0 0.0
  %523 = vmatpush1.msra.mxu0 0.0
  %524 = vmatprep.subr.mxu0 0.0
  %525 = vmatpush1.msra.mxu0 0.0
  %526 = vmatprep.subr.mxu0 0.0
  %527 = vmatpush1.msra.mxu0 0.0
  %528 = vmatprep.subr.mxu0 0.0
  %529 = vmatpush1.msra.mxu0 0.0
  %530 = vmatprep.subr.mxu0 0.0
  %531 = vmatpush1.msra.mxu0 0.0
  %532 = vmatprep.subr.mxu0 0.0
  %533 = vmatpush1.msra.mxu0 0.0
  %534 = vmatprep.subr.mxu0 0.0
  %535 = vmatpush1.msra.mxu0 0.0
  %536 = vmatprep.subr.mxu0 0.0
  %537 = vmatpush1.msra.mxu0 0.0
  %538 = vmatprep.subr.mxu0 0.0
  %539 = vmatpush1.msra.mxu0 0.0
  %540 = vmatprep.subr.mxu0 0.0
  %541 = vmatpush1.msra.mxu0 0.0
  %542 = vmatprep.subr.mxu0 0.0
  %543 = vmatpush1.msra.mxu0 0.0
  %544 = vmatprep.subr.mxu0 0.0
  %545 = vmatpush1.msra.mxu0 0.0
  %546 = vmatprep.subr.mxu0 0.0
  %547 = vmatpush1.msra.mxu0 0.0
  %548 = vmatprep.subr.mxu0 0.0
  %549 = vmatpush1.msra.mxu0 0.0
  %550 = vmatprep.subr.mxu0 0.0
  %551 = vmatpush1.msra.mxu0 0.0
  %552 = vmatprep.subr.mxu0 0.0
  %553 = vmatpush1.msra.mxu0 0.0
  %554 = vmatprep.subr.mxu0 0.0
  %555 = vmatpush1.msra.mxu0 0.0
  %556 = vmatprep.subr.mxu0 0.0
  %557 = vmatpush1.msra.mxu0 0.0
  %558 = vmatprep.subr.mxu0 0.0
  %559 = vmatpush1.msra.mxu0 0.0
  %560 = vmatprep.subr.mxu0 0.0
  %561 = vmatpush1.msra.mxu0 0.0
  %562 = vmatprep.subr.mxu0 0.0
  %563 = vmatpush1.msra.mxu0 0.0
  %564 = vmatprep.mubr.f32.mxu0 0.0
  %565 = vmatmul.mubr.f32.gmra.mrb[0].mxu0 %v498
  %v566 = vpop.f32.mrb[0].mxu0
  %v567 = vadd.f32 0.0, %v566
  %v568 = vpop.f32.mrb[0].mxu0
  %569 = vdwg.mxu0
  %v570 = vadd.f32 %v492, %v567
  %v571 = vsel %vm297, %v570, 0.0
  %572 = vadd.xlane.f32.xlu0 %v571
  %v573 = vpop.xlane.xlu0 %572
  %v574 = vmul.f32 %v570, %v570
  %v575 = vsel %vm297, %v574, 0.0
  %576 = vadd.xlane.f32.xlu0 %v575
  %v577 = vpop.xlane.xlu0 %576
  %v578 = vmul.f32 %v573, 0.03125
  %v579 = vmul.f32 %v577, 0.03125
  %v580 = vmul.f32 %v578, %v578
  %v581 = vsub.f32 %v579, %v580
  %v582 = vmax.f32 %v581, 0.0
  %v583 = vadd.f32 %v582, 1e-05
  %v584 = vrsqrt.pop %v583
  %v585 = vld [vmem:[%s5] sm:$0xff]
  %v586 = vmul.f32 %v584, %v585
  %v587 = vld [vmem:[%s6] sm:$0xff]
  %v588 = vmul.f32 %v578, %v586
  %v589 = vsub.f32 %v587, %v588
  %591 = vset.pattern.permute.xlu0 0
  %592 = vperm.xlu0 %591, %v586
  %v593 = vpop.permute.xlu0 %592
  %v595 = vmul.f32 %v570, %v593
  %597 = vset.pattern.permute.xlu0 0
  %598 = vperm.xlu0 %597, %v589
  %v599 = vpop.permute.xlu0 %598
  %v601 = vadd.f32 %v595, %v599
  %v602 = vmax.f32 %v601, 0.0
  %603 = vst.msk [vmem:[%s7] sm:$0xff] %vm297, %v602
  // Predicated region
  $region30: #{_stdconv1d_stack.1} parent=0 // pred_check
    _
  $region31: #{_stdconv1d_stack.1} parent=0 // pred_check_branch
    %605 = sbr.rel (0) target = $region33
  $region32: #{_stdconv1d_stack.1} parent=0 // pred_region
    _
  $region33: #{_stdconv1d_stack.1} parent=0 // pred_fallthru
    _
  // Predicated region
  $region34: #{_stdconv1d_stack.1} parent=0 // pred_check
    _
  $region35: #{_stdconv1d_stack.1} parent=0 // pred_check_branch
    %607 = sbr.rel (0) target = $region37
  $region36: #{_stdconv1d_stack.1} parent=0 // pred_region
    _
  $region37: #{_stdconv1d_stack.1} parent=0 // pred_fallthru
    _

</llo_original>
